<compile_context>
chip_gen: v7x
topology: tpu7x:2x2x1
jax: 0.10.0
libtpu: 0.0.40
codegen_flags: <defaults>
</compile_context>

<pallas_src>
import jax
import jax.numpy as jnp
from jax.experimental import pallas as pl
from jax.experimental.pallas import tpu as pltpu


_LANES = 128


def _make_exclusivity_kernel(n, block_rows):
    """Builds the kernel with static element count `n` and block row count."""

    def kernel(s_ref, psum_ref, carry_ref):
        i = pl.program_id(0)

        @pl.when(i == 0)
        def _init():
            psum_ref[...] = jnp.zeros_like(psum_ref)

        s = s_ref[...]                                       # (BR, 128) f32
        lane = jax.lax.broadcasted_iota(jnp.int32, s.shape, 1)
        subl = jax.lax.broadcasted_iota(jnp.int32, s.shape, 0)

        # Predecessor of each element in flat (row-major) order:
        #   (r, c>0)  -> (r, c-1)      : lane roll by +1
        #   (r>0, 0)  -> (r-1, 127)    : sublane roll feeding lane 127, then lane roll
        #   (0, 0)    -> carried last element of the previous block
        u = jnp.where(lane == _LANES - 1, pltpu.roll(s, shift=1, axis=0), s)
        pred = pltpu.roll(u, shift=1, axis=1)
        carry_b = jnp.broadcast_to(carry_ref[...], s.shape)
        pred = jnp.where((subl == 0) & (lane == 0), carry_b, pred)

        # Global flat index; diff j = s[j] - s[j-1] is valid for 1 <= j <= n-1.
        # Mask BEFORE the log so padded / out-of-bounds lanes never reach it.
        gidx = (i * block_rows + subl) * _LANES + lane
        valid = (gidx >= 1) & (gidx < n)

        diff = s - pred
        diff_safe = jnp.where(valid, diff, 1.0)
        contrib = jnp.where(valid, -jnp.log(diff_safe + 1e-12), 0.0)

        # Fold the (BR, 128) contributions into an (8, 128) accumulator with
        # VPU adds only (static 8-row chunks; same add count as a full-block
        # accumulator, but the resident output shrinks from up to 512 KiB to
        # 4 KiB of VMEM + HBM writeback).
        acc = contrib[0:8, :]
        for r0 in range(8, block_rows, 8):
            acc = acc + contrib[r0:r0 + 8, :]
        psum_ref[...] += acc

        # Carry for the next block: rotate this block's last row so the
        # block's final element lands in lane 0.  (Garbage after the last
        # real element, but it is never consumed.)
        carry_ref[...] = pltpu.roll(
            s[block_rows - 1:block_rows, :], shift=1, axis=1)

    return kernel


def exclusivity_loss(outputs, *, max_block_rows=1024):
    """JAX/Pallas equivalent of ExclusivityLoss.forward(outputs)."""
    flat = jnp.ravel(outputs).astype(jnp.float32)
    n = flat.shape[0]

    # TODO(synk): torch.sort has no Pallas/Mosaic TPU primitive; the global
    # sort runs as plain XLA jnp.sort and dominates end-to-end time.
    s = jnp.sort(flat)

    rows = pl.cdiv(n, _LANES)
    rows8 = ((rows + 7) // 8) * 8                            # (8,128) aligned
    if rows8 <= max_block_rows:
        block_rows = rows8
        total_rows = rows8
    else:
        block_rows = max_block_rows                          # multiple of 8
        # Pad to a whole number of blocks so no block window is ever OOB;
        # padded lanes are masked inside the kernel.
        total_rows = pl.cdiv(rows8, block_rows) * block_rows

    npad = total_rows * _LANES
    if npad != n:
        s = jnp.pad(s, (0, npad - n))
    s2 = s.reshape(total_rows, _LANES)

    grid = (total_rows // block_rows,)
    kernel = _make_exclusivity_kernel(n, block_rows)

    partial = pl.pallas_call(
        kernel,
        out_shape=jax.ShapeDtypeStruct((8, _LANES), jnp.float32),
        grid_spec=pltpu.PrefetchScalarGridSpec(
            num_scalar_prefetch=0,
            grid=grid,
            in_specs=[pl.BlockSpec((block_rows, _LANES), lambda i: (i, 0))],
            out_specs=pl.BlockSpec((8, _LANES), lambda i: (0, 0)),
            scratch_shapes=[pltpu.VMEM((1, _LANES), jnp.float32)],  # carry row
        ),
        compiler_params=pltpu.CompilerParams(
            dimension_semantics=("arbitrary",),
        ),
    )(s2)

    # Single tiny (8, 128) reduction of the partial sums + final mean.
    return jnp.sum(partial) / jnp.float32(n - 1)


def _reference_loss(outputs):
    flat = jnp.sort(jnp.ravel(outputs).astype(jnp.float32))
    diff = flat[1:] - flat[:-1]
    return -jnp.mean(jnp.log(diff + 1e-12))


if __name__ == "__main__":
    key = jax.random.PRNGKey(0)
    # Small NCHW-style input consistent with a segmentation/regression head.
    x = jax.random.uniform(key, (2, 4, 16, 16), dtype=jnp.float32)

    loss = exclusivity_loss(x)
    jax.block_until_ready(loss)

    ref = _reference_loss(x)
    assert jnp.allclose(loss, ref, rtol=1e-4, atol=1e-6), (loss, ref)

    print("KERNEL_OK")
</pallas_src>

<mosaic_0001>
module attributes {stable_mosaic.version = 11 : i64} {
  func.func @kernel(%arg0: i32, %arg1: memref<16x128xf32, #tpu.memory_space<vmem>>, %arg2: memref<8x128xf32, #tpu.memory_space<vmem>>, %arg3: memref<1x128xf32, #tpu.memory_space<vmem>>) attributes {dimension_semantics = [#tpu.dimension_semantics<arbitrary>], iteration_bounds = array<i64: 1>, scalar_prefetch = 0 : i64, scratch_operands = 1 : i64, tpu.core_type = #tpu.core_type<tc>, window_params = [{transform_indices = @transform_0, window_bounds = array<i64: 16, 128>}, {pipeline_mode = #tpu.pipeline_mode<synchronous>, transform_indices = @transform_1, window_bounds = array<i64: 8, 128>}]} {
    %c0_i32 = arith.constant 0 : i32
    %0 = arith.cmpi eq, %arg0, %c0_i32 : i32
    %1 = arith.extui %0 : i1 to i32
    %c0_i32_0 = arith.constant 0 : i32
    %2 = arith.cmpi ne, %1, %c0_i32_0 : i32
    scf.if %2 {
      %cst_18 = arith.constant 0.000000e+00 : f32
      %50 = vector.broadcast %cst_18 : f32 to vector<8x128xf32>
      %c0_19 = arith.constant 0 : index
      %c0_20 = arith.constant 0 : index
      %51 = vector.load %arg2[%c0_19, %c0_20] : memref<8x128xf32, #tpu.memory_space<vmem>>, vector<8x128xf32>
      tpu.vector_store %arg2[%c0_19, %c0_20], %50 {strides = array<i32>} : memref<8x128xf32, #tpu.memory_space<vmem>>, vector<8x128xf32>,
    } else {
    }
    %c0 = arith.constant 0 : index
    %c0_1 = arith.constant 0 : index
    %3 = vector.load %arg1[%c0, %c0_1] : memref<16x128xf32, #tpu.memory_space<vmem>>, vector<16x128xf32>
    %4 = tpu.iota {dimensions = array<i32: 1>} : vector<16x128xi32>
    %5 = tpu.iota {dimensions = array<i32: 0>} : vector<16x128xi32>
    %c127_i32 = arith.constant 127 : i32
    %6 = vector.broadcast %c127_i32 : i32 to vector<16x128xi32>
    %7 = arith.cmpi eq, %4, %6 : vector<16x128xi32>
    %c1_i32 = arith.constant 1 : i32
    %8 = tpu.dynamic_rotate %3 by %c1_i32 dim 0 : vector<16x128xf32>, i32 -> vector<16x128xf32>
    %9 = arith.select %7, %8, %3 : vector<16x128xi1>, vector<16x128xf32>
    %c1_i32_2 = arith.constant 1 : i32
    %10 = tpu.dynamic_rotate %9 by %c1_i32_2 dim 1 : vector<16x128xf32>, i32 -> vector<16x128xf32>
    %c0_3 = arith.constant 0 : index
    %c0_4 = arith.constant 0 : index
    %11 = vector.load %arg3[%c0_3, %c0_4] : memref<1x128xf32, #tpu.memory_space<vmem>>, vector<1x128xf32>
    %12 = vector.shape_cast %11 : vector<1x128xf32> to vector<1x128xf32>
    %13 = vector.broadcast %12 : vector<1x128xf32> to vector<16x128xf32>
    %c0_i32_5 = arith.constant 0 : i32
    %14 = vector.broadcast %c0_i32_5 : i32 to vector<16x128xi32>
    %15 = arith.cmpi eq, %5, %14 : vector<16x128xi32>
    %c0_i32_6 = arith.constant 0 : i32
    %16 = vector.broadcast %c0_i32_6 : i32 to vector<16x128xi32>
    %17 = arith.cmpi eq, %4, %16 : vector<16x128xi32>
    %18 = arith.andi %15, %17 : vector<16x128xi1>
    %19 = arith.select %18, %13, %10 : vector<16x128xi1>, vector<16x128xf32>
    %c16_i32 = arith.constant 16 : i32
    %20 = arith.muli %arg0, %c16_i32 : i32
    %21 = vector.broadcast %20 : i32 to vector<16x128xi32>
    %22 = arith.addi %21, %5 : vector<16x128xi32>
    %c128_i32 = arith.constant 128 : i32
    %23 = vector.broadcast %c128_i32 : i32 to vector<16x128xi32>
    %24 = arith.muli %22, %23 : vector<16x128xi32>
    %25 = arith.addi %24, %4 : vector<16x128xi32>
    %c1_i32_7 = arith.constant 1 : i32
    %26 = vector.broadcast %c1_i32_7 : i32 to vector<16x128xi32>
    %27 = arith.cmpi sge, %25, %26 : vector<16x128xi32>
    %c2048_i32 = arith.constant 2048 : i32
    %28 = vector.broadcast %c2048_i32 : i32 to vector<16x128xi32>
    %29 = arith.cmpi slt, %25, %28 : vector<16x128xi32>
    %30 = arith.andi %27, %29 : vector<16x128xi1>
    %31 = arith.subf %3, %19 : vector<16x128xf32>
    %cst = arith.constant 1.000000e+00 : f32
    %32 = vector.broadcast %cst : f32 to vector<16x128xf32>
    %33 = arith.select %30, %31, %32 : vector<16x128xi1>, vector<16x128xf32>
    %cst_8 = arith.constant 9.99999996E-13 : f32
    %34 = vector.broadcast %cst_8 : f32 to vector<16x128xf32>
    %35 = arith.addf %33, %34 : vector<16x128xf32>
    %36 = math.log %35 : vector<16x128xf32>
    %cst_9 = arith.constant 0.000000e+00 : f32
    %37 = vector.broadcast %cst_9 : f32 to vector<16x128xf32>
    %38 = arith.subf %37, %36 : vector<16x128xf32>
    %cst_10 = arith.constant 0.000000e+00 : f32
    %39 = vector.broadcast %cst_10 : f32 to vector<16x128xf32>
    %40 = arith.select %30, %38, %39 : vector<16x128xi1>, vector<16x128xf32>
    %41 = vector.extract_strided_slice %40 {offsets = [0, 0], sizes = [8, 128], strides = [1, 1]} : vector<16x128xf32> to vector<8x128xf32>
    %42 = vector.extract_strided_slice %40 {offsets = [8, 0], sizes = [8, 128], strides = [1, 1]} : vector<16x128xf32> to vector<8x128xf32>
    %43 = arith.addf %41, %42 : vector<8x128xf32>
    %c0_11 = arith.constant 0 : index
    %c0_12 = arith.constant 0 : index
    %44 = vector.load %arg2[%c0_11, %c0_12] : memref<8x128xf32, #tpu.memory_space<vmem>>, vector<8x128xf32>
    %45 = arith.addf %44, %43 : vector<8x128xf32>
    %c0_13 = arith.constant 0 : index
    %c0_14 = arith.constant 0 : index
    %46 = vector.load %arg2[%c0_13, %c0_14] : memref<8x128xf32, #tpu.memory_space<vmem>>, vector<8x128xf32>
    tpu.vector_store %arg2[%c0_13, %c0_14], %45 {strides = array<i32>} : memref<8x128xf32, #tpu.memory_space<vmem>>, vector<8x128xf32>,
    %47 = vector.extract_strided_slice %3 {offsets = [15, 0], sizes = [1, 128], strides = [1, 1]} : vector<16x128xf32> to vector<1x128xf32>
    %c1_i32_15 = arith.constant 1 : i32
    %48 = tpu.dynamic_rotate %47 by %c1_i32_15 dim 1 : vector<1x128xf32>, i32 -> vector<1x128xf32>
    %c0_16 = arith.constant 0 : index
    %c0_17 = arith.constant 0 : index
    %49 = vector.load %arg3[%c0_16, %c0_17] : memref<1x128xf32, #tpu.memory_space<vmem>>, vector<1x128xf32>
    tpu.vector_store %arg3[%c0_16, %c0_17], %48 {strides = array<i32>} : memref<1x128xf32, #tpu.memory_space<vmem>>, vector<1x128xf32>,
    return
  }
  func.func @transform_0(%arg0: i32) -> (i32, i32) {
    %c0_i32 = arith.constant 0 : i32
    %c0_i32_0 = arith.constant 0 : i32
    return %arg0, %c0_i32 : i32, i32
  }
  func.func @transform_1(%arg0: i32) -> (i32, i32) {
    %c0_i32 = arith.constant 0 : i32
    %c0_i32_0 = arith.constant 0 : i32
    %c0_i32_1 = arith.constant 0 : i32
    return %c0_i32, %c0_i32_0 : i32, i32
  }
}

</mosaic_0001>

<llo_original>
// kernel: tpu_custom_call.1
$region0: #{tpu_custom_call.1}
  #allocation0 [shape = 'u32[]', space=smem, size = 0x4, offset = 0x4, fixed_abs, tag = 'smem constant byte address 0x4 - core index']
  #allocation1 [shape = 'u32[144,128]{1,0:T(1,128)}', space=vmem, size = 0x12000, scoped, tag = 'internal scratch']
  #allocation2 [shape = 'f32[1,128]{1,0:T(1,128)}', space=vmem, size = 0x200, scoped, tag = 'scratch operand']
  %s0 = inlined_call_operand.hbm [shape: f32[16,128], index: 0, kind: input, shape index: {}]
  %s1 = inlined_call_operand.hbm [shape: f32[8,128], index: 1, kind: output, shape index: {}]
  %s2 = sld [smem:[#allocation0]]
  $region22: #{tpu_custom_call.1} parent=0
    _
  %s4 = ssub.s32 1, %s2
  %s5 = scalar_select 0, %s4, %s2
  $region1: #{tpu_custom_call.1} parent=0
    #allocation3 [shape = 'u8[8192]{0}', space=vmem, size = 0x2000, scoped, tag = 'input window, operand 0, single buffered']
    #allocation4 [shape = 's32[1]{0}', space=sflag, size = 0x4, scoped, tag = 'scoped memory for tpu_custom_call.1']
    #allocation5 [shape = 's32[1]{0}', space=sflag, size = 0x4, scoped, tag = 'scoped memory for tpu_custom_call.1']
    #allocation6 [shape = 'u8[4096]{0}', space=vmem, size = 0x1000, scoped, tag = 'output window, operand 0, single buffered']
    %6 = vsyncpa [#allocation4], 0
    %7 = vsyncpa [#allocation5], 0
    // Predicated region
    $region2: #{tpu_custom_call.1} parent=1 // pred_check
      _
    $region3: #{tpu_custom_call.1} parent=1 // pred_check_branch
      %9 = sbr.rel (0) target = $region5
    $region4: #{tpu_custom_call.1} parent=1 // pred_region
      %s11 = ssub.s32 256, 256
      %12 = vsyncadd [#allocation4], %s11
      %s13 = sshll.u32 [#allocation3], 4
      %s14 = int_to_ptr.vmem [resolvable:$true] %s13
      %19 = dma.hbm_to_vmem [thread:$0]  %s0, 256, %s14, [#allocation4], 128, 128, 8
    $region5: #{tpu_custom_call.1} parent=1 // pred_fallthru
      _
    // Predicated region
    $region6: #{tpu_custom_call.1} parent=1 // pred_check
      _
    $region7: #{tpu_custom_call.1} parent=1 // pred_check_branch
      %21 = sbr.rel (0) target = $region9
    $region8: #{tpu_custom_call.1} parent=1 // pred_region
      %22 = dma.done [#allocation4], 256
    $region9: #{tpu_custom_call.1} parent=1 // pred_fallthru
      _
    %p23 = scmp.eq.s32.totalorder 0, 0
    // Predicated region
    $region10: #{tpu_custom_call.1} parent=1 // pred_check
      %p24 = pneg %p23
    $region11: #{tpu_custom_call.1} parent=1 // pred_check_branch
      %26 = sbr.rel (%p24) target = $region13
    $region12: #{tpu_custom_call.1} parent=1 // pred_region
      %27 = vst [vmem:[#allocation6] sm:$0xff] 0.0
    $region13: #{tpu_custom_call.1} parent=1 // pred_fallthru
      _
    %v28 = vld [vmem:[#allocation3] sm:$0xff]
    %v29 = vld [vmem:[#allocation3 + $0x8] sm:$0xff]
    %v30 = vlaneseq
    %v31 = vand.u32 %v30, 127
    %v32 = vlaneseq
    %v33 = vshrl.u32 %v32, 7
    %v34 = vadd.s32 %v33, 8
    %vm35 = vcmp.eq.s32.totalorder %v31, 127
    %v36 = vrot.slane %v28, 7
    %v37 = vrot.slane %v29, 7
    %vm38 = vcmp.lt.s32.totalorder %v33, 1
    %v39 = vsel %vm38, %v36, %v37
    %v40 = vsel %vm38, %v37, %v36
    %v41 = vsel %vm35, %v40, %v28
    %v42 = vsel %vm35, %v39, %v29
    %43 = vrot.lane.b32.xlu0 %v41, 1
    %v44 = vpop.permute.xlu0 %43
    %45 = vrot.lane.b32.xlu0 %v42, 1
    %v46 = vpop.permute.xlu0 %45
    %v47 = vld [vmem:[#allocation2] sm:$0x1]
    %v49 = vlaneseq
    %v50 = vshrl.u32 %v49, 7
    %v51 = vsub.s32 0, %v50
    %v52 = vrot.slane %v47, %v51
    %vm54 = vcmp.eq.s32.totalorder %v33, 0
    %vm55 = vcmp.eq.s32.totalorder %v34, 0
    %vm56 = vcmp.eq.s32.totalorder %v31, 0
    %vm57 = vmand %vm54, %vm56
    %vm58 = vmand %vm55, %vm56
    %v59 = vsel %vm57, %v52, %v44
    %v60 = vsel %vm58, %v52, %v46
    %s61 = smul.u32 0, 16
    %v62 = vstv %s61
    %v63 = vadd.s32 %v62, %v33
    %v64 = vadd.s32 %v62, %v34
    %v65 = vmul.u32 %v63, 128
    %v66 = vmul.u32 %v64, 128
    %v67 = vadd.s32 %v65, %v31
    %v68 = vadd.s32 %v66, %v31
    %vm69 = vcmp.ge.s32.totalorder %v67, 1
    %vm70 = vcmp.ge.s32.totalorder %v68, 1
    %vm71 = vcmp.lt.s32.totalorder %v67, 2048
    %vm72 = vcmp.lt.s32.totalorder %v68, 2048
    %vm73 = vmand %vm69, %vm71
    %vm74 = vmand %vm70, %vm72
    %v75 = vsub.f32 %v28, %v59
    %v76 = vsub.f32 %v29, %v60
    %v77 = vsel %vm73, %v75, 1.0
    %v78 = vsel %vm74, %v76, 1.0
    %v79 = vadd.f32 %v77, 1e-12
    %v80 = vadd.f32 %v78, 1e-12
    %v81 = vlog2.pop %v79
    %v82 = vmul.f32 %v81, 0.6931472
    %v83 = vlog2.pop %v80
    %v84 = vmul.f32 %v83, 0.6931472
    %v85 = vsub.f32 0.0, %v82
    %v86 = vsub.f32 0.0, %v84
    %v87 = vsel %vm73, %v85, 0.0
    %v88 = vsel %vm74, %v86, 0.0
    %v89 = vadd.f32 %v87, %v88
    %v90 = vld [vmem:[#allocation6] sm:$0xff]
    %v91 = vadd.f32 %v90, %v89
    %92 = vst [vmem:[#allocation6] sm:$0xff] %v91
    %v94 = vrot.slane %v29, 7
    %96 = vrot.lane.b32.xlu0 %v94, 1
    %v97 = vpop.permute.xlu0 %96
    %98 = vst [vmem:[#allocation2] sm:$0x1] %v97
    // Predicated region
    $region14: #{tpu_custom_call.1} parent=1 // pred_check
      _
    $region15: #{tpu_custom_call.1} parent=1 // pred_check_branch
      %100 = sbr.rel (0) target = $region17
    $region16: #{tpu_custom_call.1} parent=1 // pred_region
      %s102 = ssub.s32 128, 128
      %103 = vsyncadd [#allocation5], %s102
      %s105 = sshll.u32 [#allocation6], 4
      %s106 = int_to_ptr.vmem [resolvable:$true] %s105
      %108 = dma.vmem_to_hbm [thread:$0]  %s106, 128, %s1, [#allocation5]
    $region17: #{tpu_custom_call.1} parent=1 // pred_fallthru
      _
    // Predicated region
    $region18: #{tpu_custom_call.1} parent=1 // pred_check
      _
    $region19: #{tpu_custom_call.1} parent=1 // pred_check_branch
      %110 = sbr.rel (0) target = $region21
    $region20: #{tpu_custom_call.1} parent=1 // pred_region
      %111 = dma.done [#allocation5], 128
    $region21: #{tpu_custom_call.1} parent=1 // pred_fallthru
      _
    %112 = vsyncpa [#allocation4], 1
    %113 = vsyncpa [#allocation5], 1

</llo_original>
